<compile_context>
chip_gen: v5e
topology: v5e:2x2
jax: 0.10.0
libtpu: 0.0.40
codegen_flags: <defaults>
</compile_context>

<pallas_src>
import math

import jax
import jax.numpy as jnp
from jax.experimental import pallas as pl
from jax.experimental.pallas import tpu as pltpu

_LANE = 128
_TARGET_TILE_BYTES = 2 * 1024 * 1024      # ~2 MiB output tile per grid step
_VMEM_LIMIT_BYTES = 32 * 1024 * 1024      # safe on v5e / v6e / v7x


def _sublane_pack(dtype):
    """Sublane packing factor: 8 for 4-byte, 16 for 2-byte, 32 for 1-byte."""
    itemsize = jnp.dtype(dtype).itemsize
    return max(8, 32 // max(1, itemsize))


# ---------------------------- kernel bodies ---------------------------------

def _sublane_store_kernel(offsets, sizes):
    """Layout A fast path: per-input aligned sublane-slice stores."""
    n = len(sizes)

    def kernel(*refs):
        o_ref = refs[n]
        for r, off, c in zip(refs[:n], offsets, sizes):
            o_ref[:, off:off + c, :] = r[...]

    return kernel


def _sublane_cat_kernel(n):
    """Layout A fallback (unaligned offsets): assemble in registers, one store."""

    def kernel(*refs):
        o_ref = refs[n]
        o_ref[...] = jnp.concatenate([r[...] for r in refs[:n]], axis=1)

    return kernel


def _lane_store_kernel(offsets, widths):
    """Layout B fast path: per-input 128-aligned lane-slice stores."""
    n = len(widths)

    def kernel(*refs):
        o_ref = refs[n]
        for r, off, w in zip(refs[:n], offsets, widths):
            o_ref[:, off:off + w] = r[...]

    return kernel


def _lane_cat_kernel(n):
    """Layout B fallback: assemble tile in registers, one coalesced store."""

    def kernel(*refs):
        o_ref = refs[n]
        o_ref[...] = jnp.concatenate([r[...] for r in refs[:n]], axis=-1)

    return kernel


# ------------------------------ wrapper --------------------------------------

def pallas_concat(xs, dim=1):
    """torch.cat(xs, dim) equivalent, implemented as a Pallas TPU kernel."""
    xs = list(xs)
    assert len(xs) >= 1, "need at least one tensor"
    nd = xs[0].ndim
    d = dim % nd if nd > 0 else 0
    dtype = xs[0].dtype
    for x in xs:
        assert x.ndim == nd and x.dtype == dtype
        for ax in range(nd):
            if ax != d:
                assert x.shape[ax] == xs[0].shape[ax]

    lead = math.prod(xs[0].shape[:d])
    trail = math.prod(xs[0].shape[d + 1:])
    cat_sizes_all = [int(x.shape[d]) for x in xs]
    c_total = sum(cat_sizes_all)
    out_shape = xs[0].shape[:d] + (c_total,) + xs[0].shape[d + 1:]

    # Degenerate / empty shapes: nothing to move.
    if c_total == 0 or lead == 0 or trail == 0:
        return jnp.zeros(out_shape, dtype)

    # Drop zero-sized inputs (they contribute nothing and make bad BlockSpecs).
    xs_nz = [x for x, c in zip(xs, cat_sizes_all) if c > 0]
    cat_sizes = [c for c in cat_sizes_all if c > 0]
    n = len(xs_nz)

    itemsize = jnp.dtype(dtype).itemsize
    pack = _sublane_pack(dtype)
    total_bytes = sum(int(x.size) * itemsize for x in xs_nz)
    cost = pl.CostEstimate(flops=0, transcendentals=0,
                           bytes_accessed=2 * total_bytes)

    if trail >= _LANE:
        # ---- layout A: (lead, C_i, trail) — concat axis on sublanes --------
        xs_flat = [x.reshape(lead, c, trail) for x, c in zip(xs_nz, cat_sizes)]

        # Lane tile: budget-driven 128-multiple when possible.
        if trail % _LANE == 0:
            ta_max = min(trail, 2048)
        elif trail <= 4096:
            ta_max = trail                  # full-extent last dim (always legal)
        else:
            ta_max = 2048                   # 128-multiple tile, masked edge block
        if ta_max == trail and trail % _LANE != 0:
            ta = trail
        else:
            ta_fit = _TARGET_TILE_BYTES // max(1, c_total * itemsize)
            ta = max(_LANE, min(ta_max, (ta_fit // _LANE) * _LANE))

        # Lead tile: grow until the output tile is ~_TARGET_TILE_BYTES so the
        # per-grid-step overhead is amortized (lead is no longer blocked at 1).
        row_bytes = c_total * ta * itemsize
        l_tile = max(1, min(lead, _TARGET_TILE_BYTES // max(1, row_bytes)))

        grid = (pl.cdiv(lead, l_tile), pl.cdiv(trail, ta))
        in_specs = [pl.BlockSpec((l_tile, c, ta), lambda i, j: (i, 0, j))
                    for c in cat_sizes]
        out_spec = pl.BlockSpec((l_tile, c_total, ta), lambda i, j: (i, 0, j))
        semantics = ("parallel", "parallel")

        offsets = [0]
        for c in cat_sizes[:-1]:
            offsets.append(offsets[-1] + c)
        aligned = all(off % pack == 0 for off in offsets)
        kernel = (_sublane_store_kernel(offsets, cat_sizes) if aligned
                  else _sublane_cat_kernel(n))
        flat_out_shape = (lead, c_total, trail)
    else:
        # ---- layout B: (lead, C_i*trail) — lane-dense output ---------------
        widths = [c * trail for c in cat_sizes]
        w_total = c_total * trail
        xs_flat = [x.reshape(lead, w) for x, w in zip(xs_nz, widths)]

        row_bytes = w_total * itemsize
        l_fit = max(pack,
                    ((_TARGET_TILE_BYTES // max(1, row_bytes)) // pack) * pack)
        l_tile = lead if lead <= l_fit else l_fit

        grid = (pl.cdiv(lead, l_tile),)
        in_specs = [pl.BlockSpec((l_tile, w), lambda i: (i, 0)) for w in widths]
        out_spec = pl.BlockSpec((l_tile, w_total), lambda i: (i, 0))
        semantics = ("parallel",)

        offsets = [0]
        for w in widths[:-1]:
            offsets.append(offsets[-1] + w)
        aligned = all(off % _LANE == 0 for off in offsets)
        kernel = (_lane_store_kernel(offsets, widths) if aligned
                  else _lane_cat_kernel(n))
        flat_out_shape = (lead, w_total)

    out = pl.pallas_call(
        kernel,
        out_shape=jax.ShapeDtypeStruct(flat_out_shape, dtype),
        grid_spec=pltpu.PrefetchScalarGridSpec(
            num_scalar_prefetch=0,
            grid=grid,
            in_specs=in_specs,
            out_specs=out_spec,
        ),
        compiler_params=pltpu.CompilerParams(
            dimension_semantics=semantics,
            vmem_limit_bytes=_VMEM_LIMIT_BYTES),
        cost_estimate=cost,
    )(*xs_flat)

    return out.reshape(out_shape)


def concat_reference(xs, dim=1):
    """Pure-JAX reference matching torch.cat(xs, dim)."""
    return jnp.concatenate(xs, axis=dim)


if __name__ == "__main__":
    key = jax.random.PRNGKey(0)
    k1, k2, k3 = jax.random.split(key, 3)
    # Small NCHW feature maps (YOLO-style): concat along channels (dim=1).
    x1 = jax.random.normal(k1, (2, 8, 16, 16), dtype=jnp.float32)
    x2 = jax.random.normal(k2, (2, 16, 16, 16), dtype=jnp.float32)
    x3 = jax.random.normal(k3, (2, 8, 16, 16), dtype=jnp.float32)
    xs = [x1, x2, x3]

    out = pallas_concat(xs, dim=1)
    out = jax.block_until_ready(out)

    ref = concat_reference(xs, dim=1)
    assert out.shape == ref.shape == (2, 32, 16, 16)
    assert jnp.array_equal(out, ref), "mismatch vs reference"
    print("KERNEL_OK")
</pallas_src>

<mosaic_0001>
module attributes {stable_mosaic.version = 11 : i64} {
  func.func @kernel(%arg0: i32, %arg1: i32, %arg2: memref<2x8x256xf32, #tpu.memory_space<vmem>>, %arg3: memref<2x16x256xf32, #tpu.memory_space<vmem>>, %arg4: memref<2x8x256xf32, #tpu.memory_space<vmem>>, %arg5: memref<2x32x256xf32, #tpu.memory_space<vmem>>) attributes {dimension_semantics = [#tpu.dimension_semantics<parallel>, #tpu.dimension_semantics<parallel>], iteration_bounds = array<i64: 1, 1>, scalar_prefetch = 0 : i64, scratch_operands = 0 : i64, tpu.core_type = #tpu.core_type<tc>, window_params = [{transform_indices = @transform_0, window_bounds = array<i64: 2, 8, 256>}, {transform_indices = @transform_1, window_bounds = array<i64: 2, 16, 256>}, {transform_indices = @transform_2, window_bounds = array<i64: 2, 8, 256>}, {transform_indices = @transform_3, window_bounds = array<i64: 2, 32, 256>}]} {
    %c0 = arith.constant 0 : index
    %c0_0 = arith.constant 0 : index
    %c0_1 = arith.constant 0 : index
    %0 = vector.load %arg2[%c0, %c0_0, %c0_1] : memref<2x8x256xf32, #tpu.memory_space<vmem>>, vector<2x8x256xf32>
    %c0_2 = arith.constant 0 : index
    %c0_3 = arith.constant 0 : index
    %c0_4 = arith.constant 0 : index
    %1 = vector.load %arg5[%c0_2, %c0_3, %c0_4] : memref<2x32x256xf32, #tpu.memory_space<vmem>>, vector<2x8x256xf32>
    tpu.vector_store %arg5[%c0_2, %c0_3, %c0_4], %0 {strides = array<i32>} : memref<2x32x256xf32, #tpu.memory_space<vmem>>, vector<2x8x256xf32>,
    %c0_5 = arith.constant 0 : index
    %c0_6 = arith.constant 0 : index
    %c0_7 = arith.constant 0 : index
    %2 = vector.load %arg3[%c0_5, %c0_6, %c0_7] : memref<2x16x256xf32, #tpu.memory_space<vmem>>, vector<2x16x256xf32>
    %c0_8 = arith.constant 0 : index
    %c8 = arith.constant 8 : index
    %c0_9 = arith.constant 0 : index
    %3 = vector.load %arg5[%c0_8, %c8, %c0_9] : memref<2x32x256xf32, #tpu.memory_space<vmem>>, vector<2x16x256xf32>
    tpu.vector_store %arg5[%c0_8, %c8, %c0_9], %2 {strides = array<i32>} : memref<2x32x256xf32, #tpu.memory_space<vmem>>, vector<2x16x256xf32>,
    %c0_10 = arith.constant 0 : index
    %c0_11 = arith.constant 0 : index
    %c0_12 = arith.constant 0 : index
    %4 = vector.load %arg4[%c0_10, %c0_11, %c0_12] : memref<2x8x256xf32, #tpu.memory_space<vmem>>, vector<2x8x256xf32>
    %c0_13 = arith.constant 0 : index
    %c24 = arith.constant 24 : index
    %c0_14 = arith.constant 0 : index
    %5 = vector.load %arg5[%c0_13, %c24, %c0_14] : memref<2x32x256xf32, #tpu.memory_space<vmem>>, vector<2x8x256xf32>
    tpu.vector_store %arg5[%c0_13, %c24, %c0_14], %4 {strides = array<i32>} : memref<2x32x256xf32, #tpu.memory_space<vmem>>, vector<2x8x256xf32>,
    return
  }
  func.func @transform_0(%arg0: i32, %arg1: i32) -> (i32, i32, i32) {
    %c0_i32 = arith.constant 0 : i32
    %c0_i32_0 = arith.constant 0 : i32
    return %arg0, %c0_i32, %arg1 : i32, i32, i32
  }
  func.func @transform_1(%arg0: i32, %arg1: i32) -> (i32, i32, i32) {
    %c0_i32 = arith.constant 0 : i32
    %c0_i32_0 = arith.constant 0 : i32
    return %arg0, %c0_i32, %arg1 : i32, i32, i32
  }
  func.func @transform_2(%arg0: i32, %arg1: i32) -> (i32, i32, i32) {
    %c0_i32 = arith.constant 0 : i32
    %c0_i32_0 = arith.constant 0 : i32
    return %arg0, %c0_i32, %arg1 : i32, i32, i32
  }
  func.func @transform_3(%arg0: i32, %arg1: i32) -> (i32, i32, i32) {
    %c0_i32 = arith.constant 0 : i32
    %c0_i32_0 = arith.constant 0 : i32
    return %arg0, %c0_i32, %arg1 : i32, i32, i32
  }
}

</mosaic_0001>

<llo_original>
// kernel: tpu_custom_call.1
$region0: #{tpu_custom_call.1}
  #allocation0 [shape = 'u32[]', space=smem, size = 0x4, offset = 0x4, fixed_abs, tag = 'smem constant byte address 0x4 - core index']
  #allocation1 [shape = 'u32[72,128]{1,0:T(1,128)}', space=vmem, size = 0x9000, scoped, tag = 'internal scratch']
  %s0 = inlined_call_operand.hbm [shape: f32[2,8,256], index: 0, kind: input, shape index: {}]
  %s1 = inlined_call_operand.hbm [shape: f32[2,16,256], index: 1, kind: input, shape index: {}]
  %s2 = inlined_call_operand.hbm [shape: f32[2,8,256], index: 2, kind: input, shape index: {}]
  %s3 = inlined_call_operand.hbm [shape: f32[2,32,256], index: 3, kind: output, shape index: {}]
  %s4 = sld [smem:[#allocation0]]
  $region34: #{tpu_custom_call.1} parent=0
    _
  %s6 = ssub.s32 1, %s4
  %s7 = scalar_select 0, %s6, %s4
  $region1: #{tpu_custom_call.1} parent=0
    #allocation2 [shape = 'u8[16384]{0}', space=vmem, size = 0x4000, scoped, tag = 'input window, operand 0, single buffered']
    #allocation3 [shape = 's32[1]{0}', space=sflag, size = 0x4, scoped, tag = 'scoped memory for tpu_custom_call.1']
    #allocation4 [shape = 's32[1]{0}', space=sflag, size = 0x4, scoped, tag = 'scoped memory for tpu_custom_call.1']
    #allocation5 [shape = 'u8[32768]{0}', space=vmem, size = 0x8000, scoped, tag = 'input window, operand 1, single buffered']
    #allocation6 [shape = 's32[1]{0}', space=sflag, size = 0x4, scoped, tag = 'scoped memory for tpu_custom_call.1']
    #allocation7 [shape = 'u8[16384]{0}', space=vmem, size = 0x4000, scoped, tag = 'input window, operand 2, single buffered']
    #allocation8 [shape = 'u8[65536]{0}', space=vmem, size = 0x10000, scoped, tag = 'output window, operand 0, single buffered']
    %8 = vsyncpa [#allocation3], 0
    %9 = vsyncpa [#allocation6], 0
    %10 = vsyncpa [#allocation4], 0
    // Predicated region
    $region2: #{tpu_custom_call.1} parent=1 // pred_check
      _
    $region3: #{tpu_custom_call.1} parent=1 // pred_check_branch
      %12 = sbr.rel (0) target = $region5
    $region4: #{tpu_custom_call.1} parent=1 // pred_region
      %14 = vsyncadd [#allocation3], 0
      %s15 = sshll.u32 %s0, 4
      %s16 = int_to_ptr.hbm [resolvable:$true] %s15
      %s17 = sshll.u32 [#allocation2], 4
      %s18 = int_to_ptr.vmem [resolvable:$true] %s17
      %23 = dma.hbm_to_vmem [thread:$0]  %s16, 512, %s18, [#allocation3], 256, 256, 16
    $region5: #{tpu_custom_call.1} parent=1 // pred_fallthru
      _
    // Predicated region
    $region6: #{tpu_custom_call.1} parent=1 // pred_check
      _
    $region7: #{tpu_custom_call.1} parent=1 // pred_check_branch
      %25 = sbr.rel (0) target = $region9
    $region8: #{tpu_custom_call.1} parent=1 // pred_region
      %27 = vsyncadd [#allocation6], 0
      %s28 = sshll.u32 %s1, 4
      %s29 = int_to_ptr.hbm [resolvable:$true] %s28
      %s30 = sshll.u32 [#allocation5], 4
      %s31 = int_to_ptr.vmem [resolvable:$true] %s30
      %36 = dma.hbm_to_vmem [thread:$0]  %s29, 1024, %s31, [#allocation6], 256, 256, 16
    $region9: #{tpu_custom_call.1} parent=1 // pred_fallthru
      _
    // Predicated region
    $region10: #{tpu_custom_call.1} parent=1 // pred_check
      _
    $region11: #{tpu_custom_call.1} parent=1 // pred_check_branch
      %38 = sbr.rel (0) target = $region13
    $region12: #{tpu_custom_call.1} parent=1 // pred_region
      %40 = vsyncadd [#allocation6], 0
      %s41 = sshll.u32 %s2, 4
      %s42 = int_to_ptr.hbm [resolvable:$true] %s41
      %s43 = sshll.u32 [#allocation7], 4
      %s44 = int_to_ptr.vmem [resolvable:$true] %s43
      %49 = dma.hbm_to_vmem [thread:$0]  %s42, 512, %s44, [#allocation6], 256, 256, 16
    $region13: #{tpu_custom_call.1} parent=1 // pred_fallthru
      _
    // Predicated region
    $region14: #{tpu_custom_call.1} parent=1 // pred_check
      _
    $region15: #{tpu_custom_call.1} parent=1 // pred_check_branch
      %51 = sbr.rel (0) target = $region17
    $region16: #{tpu_custom_call.1} parent=1 // pred_region
      %53 = dma.done [#allocation3], 512
    $region17: #{tpu_custom_call.1} parent=1 // pred_fallthru
      _
    // Predicated region
    $region18: #{tpu_custom_call.1} parent=1 // pred_check
      _
    $region19: #{tpu_custom_call.1} parent=1 // pred_check_branch
      %55 = sbr.rel (0) target = $region21
    $region20: #{tpu_custom_call.1} parent=1 // pred_region
      %57 = dma.done [#allocation6], 1024
    $region21: #{tpu_custom_call.1} parent=1 // pred_fallthru
      _
    // Predicated region
    $region22: #{tpu_custom_call.1} parent=1 // pred_check
      _
    $region23: #{tpu_custom_call.1} parent=1 // pred_check_branch
      %59 = sbr.rel (0) target = $region25
    $region24: #{tpu_custom_call.1} parent=1 // pred_region
      %61 = dma.done [#allocation6], 512
    $region25: #{tpu_custom_call.1} parent=1 // pred_fallthru
      _
    %v62 = vld [vmem:[#allocation2] sm:$0xff]
    %v63 = vld [vmem:[#allocation2 + $0x8] sm:$0xff]
    %v64 = vld [vmem:[#allocation2 + $0x10] sm:$0xff]
    %v65 = vld [vmem:[#allocation2 + $0x18] sm:$0xff]
    %66 = vst [vmem:[#allocation8] sm:$0xff] %v62
    %67 = vst [vmem:[#allocation8 + $0x8] sm:$0xff] %v63
    %68 = vst [vmem:[#allocation8 + $0x40] sm:$0xff] %v64
    %69 = vst [vmem:[#allocation8 + $0x48] sm:$0xff] %v65
    %v70 = vld [vmem:[#allocation5] sm:$0xff]
    %v71 = vld [vmem:[#allocation5 + $0x8] sm:$0xff]
    %v72 = vld [vmem:[#allocation5 + $0x10] sm:$0xff]
    %v73 = vld [vmem:[#allocation5 + $0x18] sm:$0xff]
    %v74 = vld [vmem:[#allocation5 + $0x20] sm:$0xff]
    %v75 = vld [vmem:[#allocation5 + $0x28] sm:$0xff]
    %v76 = vld [vmem:[#allocation5 + $0x30] sm:$0xff]
    %v77 = vld [vmem:[#allocation5 + $0x38] sm:$0xff]
    %78 = vst [vmem:[#allocation8 + $0x10] sm:$0xff] %v70
    %79 = vst [vmem:[#allocation8 + $0x18] sm:$0xff] %v71
    %80 = vst [vmem:[#allocation8 + $0x20] sm:$0xff] %v72
    %81 = vst [vmem:[#allocation8 + $0x28] sm:$0xff] %v73
    %82 = vst [vmem:[#allocation8 + $0x50] sm:$0xff] %v74
    %83 = vst [vmem:[#allocation8 + $0x58] sm:$0xff] %v75
    %84 = vst [vmem:[#allocation8 + $0x60] sm:$0xff] %v76
    %85 = vst [vmem:[#allocation8 + $0x68] sm:$0xff] %v77
    %v86 = vld [vmem:[#allocation7] sm:$0xff]
    %v87 = vld [vmem:[#allocation7 + $0x8] sm:$0xff]
    %v88 = vld [vmem:[#allocation7 + $0x10] sm:$0xff]
    %v89 = vld [vmem:[#allocation7 + $0x18] sm:$0xff]
    %90 = vst [vmem:[#allocation8 + $0x30] sm:$0xff] %v86
    %91 = vst [vmem:[#allocation8 + $0x38] sm:$0xff] %v87
    %92 = vst [vmem:[#allocation8 + $0x70] sm:$0xff] %v88
    %93 = vst [vmem:[#allocation8 + $0x78] sm:$0xff] %v89
    // Predicated region
    $region26: #{tpu_custom_call.1} parent=1 // pred_check
      _
    $region27: #{tpu_custom_call.1} parent=1 // pred_check_branch
      %95 = sbr.rel (0) target = $region29
    $region28: #{tpu_custom_call.1} parent=1 // pred_region
      %97 = vsyncadd [#allocation4], 0
      %s98 = sshll.u32 [#allocation8], 4
      %s99 = int_to_ptr.vmem [resolvable:$true] %s98
      %s100 = sshll.u32 %s3, 4
      %s101 = int_to_ptr.hbm [resolvable:$true] %s100
      %106 = dma.vmem_to_hbm [thread:$0]  %s99, 2048, %s101, [#allocation4], 256, 256, 16
    $region29: #{tpu_custom_call.1} parent=1 // pred_fallthru
      _
    // Predicated region
    $region30: #{tpu_custom_call.1} parent=1 // pred_check
      _
    $region31: #{tpu_custom_call.1} parent=1 // pred_check_branch
      %108 = sbr.rel (0) target = $region33
    $region32: #{tpu_custom_call.1} parent=1 // pred_region
      %110 = dma.done [#allocation4], 2048
    $region33: #{tpu_custom_call.1} parent=1 // pred_fallthru
      _
    %111 = vsyncpa [#allocation3], 1
    %112 = vsyncpa [#allocation6], 1
    %113 = vsyncpa [#allocation4], 1

</llo_original>
